<compile_context>
chip_gen: v6e
topology: v6e:2x2x1
jax: 0.10.0
libtpu: 0.0.40
codegen_flags: <defaults>
</compile_context>

<pallas_src>
import functools

import jax
import jax.numpy as jnp
from jax.experimental import pallas as pl
from jax.experimental.pallas import tpu as pltpu


def vad_kernel(h_ref, w1_ref, b1_ref, w2_ref, b2_ref, w3_ref, b3_ref,
               out_ref, acc_ref, *, seq_len, t_tile):
    t = pl.program_id(1)
    last = pl.num_programs(1) - 1

    @pl.when(t == 0)
    def _():
        acc_ref[...] = jnp.zeros_like(acc_ref)

    if seq_len % t_tile == 0:
        # No remainder: every tile takes the cheap plain-sum path.
        acc_ref[...] += jnp.sum(h_ref[...].astype(jnp.float32), axis=1)
    else:
        # Steady state: plain cast+sum only (no iota / compare / select).
        @pl.when(t != last)
        def _():
            acc_ref[...] += jnp.sum(h_ref[...].astype(jnp.float32), axis=1)

        # Last tile only: mask padded rows so the mean stays unbiased.
        # (Mask via jnp.where BEFORE accumulation: OOB garbage never enters
        #  arithmetic, even if it is NaN/Inf.)
        @pl.when(t == last)
        def _():
            h = h_ref[...].astype(jnp.float32)
            row = t * t_tile + jax.lax.broadcasted_iota(jnp.int32, h.shape, 1)
            h = jnp.where(row < seq_len, h, 0.0)
            acc_ref[...] += jnp.sum(h, axis=1)

    @pl.when(t == last)
    def _():
        pooled = acc_ref[...] * (1.0 / seq_len)            # [TB, H]
        # Fused heads: layer1 concatenated, layers 2/3 block-diagonal.
        # Weights may be stored bf16; compute/accumulate in f32.
        x = jnp.dot(pooled, w1_ref[...].astype(jnp.float32),
                    preferred_element_type=jnp.float32) + b1_ref[...]   # [TB, 768]
        x = jnp.maximum(x, 0.0)
        # Dropout(0.3) -> identity (eval mode)
        x = jnp.dot(x, w2_ref[...].astype(jnp.float32),
                    preferred_element_type=jnp.float32) + b2_ref[...]   # [TB, 192]
        x = jnp.dot(x, w3_ref[...].astype(jnp.float32),
                    preferred_element_type=jnp.float32) + b3_ref[...]   # [TB, 3]
        out_ref[...] = x.astype(out_ref.dtype)


def make_head_params(key, hidden_size, scale=0.02):
    """Synthetic params for one head: Linear(H,256), Linear(256,64), Linear(64,1)."""
    k1, k2, k3, k4, k5, k6 = jax.random.split(key, 6)
    w1 = scale * jax.random.normal(k1, (hidden_size, 256), jnp.float32)
    b1 = scale * jax.random.normal(k2, (1, 256), jnp.float32)
    w2 = scale * jax.random.normal(k3, (256, 64), jnp.float32)
    b2 = scale * jax.random.normal(k4, (1, 64), jnp.float32)
    w3 = scale * jax.random.normal(k5, (64, 1), jnp.float32)
    b3 = scale * jax.random.normal(k6, (1, 1), jnp.float32)
    return (w1, b1, w2, b2, w3, b3)


def _fuse_head_params(params_v, params_a, params_d):
    """Fuse the 3 heads into a single Linear chain (exact: ReLU is elementwise)."""
    heads = (params_v, params_a, params_d)
    w1 = jnp.concatenate([p[0] for p in heads], axis=1)              # [H, 768]
    b1 = jnp.concatenate([p[1] for p in heads], axis=1)              # [1, 768]
    w2 = jax.scipy.linalg.block_diag(*[p[2] for p in heads])         # [768, 192]
    b2 = jnp.concatenate([p[3] for p in heads], axis=1)              # [1, 192]
    w3 = jax.scipy.linalg.block_diag(*[p[4] for p in heads])         # [192, 3]
    b3 = jnp.concatenate([p[5] for p in heads], axis=1)              # [1, 3]
    return (w1, b1, w2, b2, w3, b3)


def _vmem_capacity_bytes():
    try:
        return int(pltpu.get_tpu_info().vmem_capacity_bytes)
    except Exception:
        return 64 << 20  # conservative (v7x-sized) fallback


def _sublane_align(dtype_bytes):
    # f32 -> 8 rows/sublane group; bf16 packs 2 rows (16); int8/fp8 pack 4 (32).
    return 8 * max(1, 4 // max(1, dtype_bytes))


def _pick_tiles(B, T, H, dtype_bytes, vmem_cap_bytes):
    """Pick (TB, TT): batch tile valid for the [B,3] output spec, seq tile from
    a generation-aware byte budget, aligned to the dtype sublane packing."""
    # TB must be a multiple of 8 or equal to B (BlockSpec rule on the [B,3]
    # output).  B > 8 -> TB = 8 guarantees >= 2 'parallel' blocks for v7x's
    # two TensorCores.
    tb = B if B <= 8 else 8

    # Per-input-buffer budget: ~20 MiB on 128-MiB-VMEM parts (v5e/v6e),
    # ~12 MiB on 64-MiB parts (v7x).  Two buffers are live (double-buffering).
    budget = (20 << 20) if vmem_cap_bytes >= (96 << 20) else (12 << 20)
    align = _sublane_align(dtype_bytes)

    tt = int(budget // max(1, tb * H * dtype_bytes))
    if tt >= T:
        tt = T                                   # whole sequence in one tile
    else:
        tt = max(align, (tt // align) * align)   # keep sublane-packed layout
        tt = min(tt, T)
    return tb, tt


def vad_predictor_forward(last_hidden_state, params_v, params_a, params_d,
                          seq_tile=None):
    B, T, H = last_hidden_state.shape
    dtype_bytes = jnp.dtype(last_hidden_state.dtype).itemsize
    vmem_cap = _vmem_capacity_bytes()

    TB, TT = _pick_tiles(B, T, H, dtype_bytes, vmem_cap)
    if seq_tile is not None:                     # test hook: force a seq tile
        TT = int(seq_tile)

    fused = _fuse_head_params(params_v, params_a, params_d)
    w1, b1, w2, b2, w3, b3 = fused
    if last_hidden_state.dtype == jnp.bfloat16:
        # Halve the one-time weight DMA / VMEM footprint when streaming bf16;
        # matmuls still accumulate in f32 (cast back inside the kernel).
        w1 = w1.astype(jnp.bfloat16)
        w2 = w2.astype(jnp.bfloat16)
    fused = (w1, b1, w2, b2, w3, b3)

    # Constant index_maps -> weights are DMA'd once and stay resident.
    weight_specs = [
        pl.BlockSpec(w.shape, lambda bi, ti: (0, 0)) for w in fused
    ]

    # Explicit VMEM budget with headroom, capped at ~85% of hardware VMEM:
    # 2x input buffers + (double-buffered) weights + accumulator + output.
    weight_bytes = sum(int(w.size) * jnp.dtype(w.dtype).itemsize for w in fused)
    est = (2 * TB * TT * H * dtype_bytes
           + 2 * weight_bytes
           + TB * H * 4
           + 2 * TB * 3 * 4)
    vmem_limit = int(min(max(2 * est, 16 << 20), int(0.85 * vmem_cap)))

    kernel = functools.partial(vad_kernel, seq_len=T, t_tile=TT)

    out = pl.pallas_call(
        kernel,
        out_shape=jax.ShapeDtypeStruct((B, 3), jnp.float32),
        grid_spec=pltpu.PrefetchScalarGridSpec(
            num_scalar_prefetch=0,
            grid=(pl.cdiv(B, TB), pl.cdiv(T, TT)),
            in_specs=[pl.BlockSpec((TB, TT, H), lambda bi, ti: (bi, ti, 0))]
                     + weight_specs,
            out_specs=pl.BlockSpec((TB, 3), lambda bi, ti: (bi, 0)),
            scratch_shapes=[pltpu.VMEM((TB, H), jnp.float32)],
        ),
        compiler_params=pltpu.CompilerParams(
            dimension_semantics=("parallel", "arbitrary"),
            vmem_limit_bytes=vmem_limit,
        ),
    )(last_hidden_state, *fused)

    # squeeze(-1), mirroring the PyTorch module's output dict
    return {
        "valence": out[:, 0],
        "arousal": out[:, 1],
        "dominance": out[:, 2],
    }


def reference_forward(last_hidden_state, params_v, params_a, params_d):
    pooled = jnp.mean(last_hidden_state.astype(jnp.float32), axis=1)

    def head(p):
        w1, b1, w2, b2, w3, b3 = p
        x = jnp.maximum(pooled @ w1 + b1, 0.0)
        x = x @ w2 + b2
        x = x @ w3 + b3
        return x[:, 0]

    return {"valence": head(params_v),
            "arousal": head(params_a),
            "dominance": head(params_d)}


def _check(out, ref, B, tag):
    for name in ("valence", "arousal", "dominance"):
        assert out[name].shape == (B,), (tag, name, out[name].shape)
        assert jnp.allclose(out[name], ref[name], atol=1e-5, rtol=1e-5), (tag, name)


if __name__ == "__main__":
    key = jax.random.PRNGKey(0)
    k_x, k_v, k_a, k_d, k_x2 = jax.random.split(key, 5)

    # Small, module-consistent shapes: batch=2, seq=8, hidden=32
    B, T, H = 2, 8, 32
    last_hidden_state = jax.random.normal(k_x, (B, T, H), jnp.float32)
    params_v = make_head_params(k_v, H)
    params_a = make_head_params(k_a, H)
    params_d = make_head_params(k_d, H)

    out = vad_predictor_forward(last_hidden_state, params_v, params_a, params_d)
    out = jax.tree_util.tree_map(jax.block_until_ready, out)
    ref = reference_forward(last_hidden_state, params_v, params_a, params_d)
    _check(out, ref, B, "single-tile")

    # Exercise the gated remainder-mask path: T=12 with a forced seq tile of 8
    # (steady-state tile is plain-sum, last tile is masked).
    T2 = 12
    x2 = jax.random.normal(k_x2, (B, T2, H), jnp.float32)
    out2 = vad_predictor_forward(x2, params_v, params_a, params_d, seq_tile=8)
    out2 = jax.tree_util.tree_map(jax.block_until_ready, out2)
    ref2 = reference_forward(x2, params_v, params_a, params_d)
    _check(out2, ref2, B, "remainder-tile")

    print("KERNEL_OK")
</pallas_src>

<mosaic_0001>
module attributes {stable_mosaic.version = 11 : i64} {
  func.func @vad_kernel(%arg0: i32, %arg1: i32, %arg2: memref<2x8x32xf32, #tpu.memory_space<vmem>>, %arg3: memref<32x768xf32, #tpu.memory_space<vmem>>, %arg4: memref<1x768xf32, #tpu.memory_space<vmem>>, %arg5: memref<768x192xf32, #tpu.memory_space<vmem>>, %arg6: memref<1x192xf32, #tpu.memory_space<vmem>>, %arg7: memref<192x3xf32, #tpu.memory_space<vmem>>, %arg8: memref<1x3xf32, #tpu.memory_space<vmem>>, %arg9: memref<2x3xf32, #tpu.memory_space<vmem>>, %arg10: memref<2x32xf32, #tpu.memory_space<vmem>>) attributes {dimension_semantics = [#tpu.dimension_semantics<parallel>, #tpu.dimension_semantics<arbitrary>], iteration_bounds = array<i64: 1, 1>, scalar_prefetch = 0 : i64, scratch_operands = 1 : i64, tpu.core_type = #tpu.core_type<tc>, window_params = [{transform_indices = @transform_0, window_bounds = array<i64: 2, 8, 32>}, {pipeline_mode = #tpu.pipeline_mode<synchronous>, transform_indices = @transform_1, window_bounds = array<i64: 32, 768>}, {pipeline_mode = #tpu.pipeline_mode<synchronous>, transform_indices = @transform_2, window_bounds = array<i64: 1, 768>}, {pipeline_mode = #tpu.pipeline_mode<synchronous>, transform_indices = @transform_3, window_bounds = array<i64: 768, 192>}, {pipeline_mode = #tpu.pipeline_mode<synchronous>, transform_indices = @transform_4, window_bounds = array<i64: 1, 192>}, {pipeline_mode = #tpu.pipeline_mode<synchronous>, transform_indices = @transform_5, window_bounds = array<i64: 192, 3>}, {pipeline_mode = #tpu.pipeline_mode<synchronous>, transform_indices = @transform_6, window_bounds = array<i64: 1, 3>}, {transform_indices = @transform_7, window_bounds = array<i64: 2, 3>}]} {
    %c0_i32 = arith.constant 0 : i32
    %0 = arith.cmpi eq, %arg1, %c0_i32 : i32
    %1 = arith.extui %0 : i1 to i32
    %c0_i32_0 = arith.constant 0 : i32
    %2 = arith.cmpi ne, %1, %c0_i32_0 : i32
    scf.if %2 {
      %cst_9 = arith.constant 0.000000e+00 : f32
      %11 = vector.broadcast %cst_9 : f32 to vector<2x32xf32>
      %c0_10 = arith.constant 0 : index
      %c0_11 = arith.constant 0 : index
      %12 = vector.load %arg10[%c0_10, %c0_11] : memref<2x32xf32, #tpu.memory_space<vmem>>, vector<2x32xf32>
      tpu.vector_store %arg10[%c0_10, %c0_11], %11 {strides = array<i32>} : memref<2x32xf32, #tpu.memory_space<vmem>>, vector<2x32xf32>,
    } else {
    }
    %c0 = arith.constant 0 : index
    %c0_1 = arith.constant 0 : index
    %3 = vector.load %arg10[%c0, %c0_1] : memref<2x32xf32, #tpu.memory_space<vmem>>, vector<2x32xf32>
    %c0_2 = arith.constant 0 : index
    %c0_3 = arith.constant 0 : index
    %c0_4 = arith.constant 0 : index
    %4 = vector.load %arg2[%c0_2, %c0_3, %c0_4] : memref<2x8x32xf32, #tpu.memory_space<vmem>>, vector<2x8x32xf32>
    %cst = arith.constant dense<0.000000e+00> : vector<2x32xf32>
    %5 = vector.multi_reduction <add>, %4, %cst [1] : vector<2x8x32xf32> to vector<2x32xf32>
    %6 = arith.addf %3, %5 : vector<2x32xf32>
    %c0_5 = arith.constant 0 : index
    %c0_6 = arith.constant 0 : index
    %7 = vector.load %arg10[%c0_5, %c0_6] : memref<2x32xf32, #tpu.memory_space<vmem>>, vector<2x32xf32>
    tpu.vector_store %arg10[%c0_5, %c0_6], %6 {strides = array<i32>} : memref<2x32xf32, #tpu.memory_space<vmem>>, vector<2x32xf32>,
    %c0_i32_7 = arith.constant 0 : i32
    %8 = arith.cmpi eq, %arg1, %c0_i32_7 : i32
    %9 = arith.extui %8 : i1 to i32
    %c0_i32_8 = arith.constant 0 : i32
    %10 = arith.cmpi ne, %9, %c0_i32_8 : i32
    scf.if %10 {
      %c0_9 = arith.constant 0 : index
      %c0_10 = arith.constant 0 : index
      %11 = vector.load %arg10[%c0_9, %c0_10] : memref<2x32xf32, #tpu.memory_space<vmem>>, vector<2x32xf32>
      %cst_11 = arith.constant 1.250000e-01 : f32
      %12 = vector.broadcast %cst_11 : f32 to vector<2x32xf32>
      %13 = arith.mulf %11, %12 : vector<2x32xf32>
      %c0_12 = arith.constant 0 : index
      %c0_13 = arith.constant 0 : index
      %14 = vector.load %arg3[%c0_12, %c0_13] : memref<32x768xf32, #tpu.memory_space<vmem>>, vector<32x768xf32>
      %cst_14 = arith.constant dense<0.000000e+00> : vector<2x768xf32>
      %15 = tpu.matmul %13, %14, %cst_14 {dimension_numbers = #tpu.dot_dimension_numbers<[1], [0], [0], [1], [0, 0, 1, 1], [], []>} : vector<2x32xf32>, vector<32x768xf32>, vector<2x768xf32> -> vector<2x768xf32>
      %c0_15 = arith.constant 0 : index
      %c0_16 = arith.constant 0 : index
      %16 = vector.load %arg4[%c0_15, %c0_16] : memref<1x768xf32, #tpu.memory_space<vmem>>, vector<1x768xf32>
      %17 = vector.broadcast %16 : vector<1x768xf32> to vector<2x768xf32>
      %18 = arith.addf %15, %17 : vector<2x768xf32>
      %cst_17 = arith.constant 0.000000e+00 : f32
      %19 = vector.broadcast %cst_17 : f32 to vector<2x768xf32>
      %20 = arith.maximumf %18, %19 : vector<2x768xf32>
      %c0_18 = arith.constant 0 : index
      %c0_19 = arith.constant 0 : index
      %21 = vector.load %arg5[%c0_18, %c0_19] : memref<768x192xf32, #tpu.memory_space<vmem>>, vector<768x192xf32>
      %cst_20 = arith.constant dense<0.000000e+00> : vector<2x192xf32>
      %22 = tpu.matmul %20, %21, %cst_20 {dimension_numbers = #tpu.dot_dimension_numbers<[1], [0], [0], [1], [0, 0, 1, 1], [], []>} : vector<2x768xf32>, vector<768x192xf32>, vector<2x192xf32> -> vector<2x192xf32>
      %c0_21 = arith.constant 0 : index
      %c0_22 = arith.constant 0 : index
      %23 = vector.load %arg6[%c0_21, %c0_22] : memref<1x192xf32, #tpu.memory_space<vmem>>, vector<1x192xf32>
      %24 = vector.broadcast %23 : vector<1x192xf32> to vector<2x192xf32>
      %25 = arith.addf %22, %24 : vector<2x192xf32>
      %c0_23 = arith.constant 0 : index
      %c0_24 = arith.constant 0 : index
      %26 = vector.load %arg7[%c0_23, %c0_24] : memref<192x3xf32, #tpu.memory_space<vmem>>, vector<192x3xf32>
      %cst_25 = arith.constant dense<0.000000e+00> : vector<2x3xf32>
      %27 = tpu.matmul %25, %26, %cst_25 {dimension_numbers = #tpu.dot_dimension_numbers<[1], [0], [0], [1], [0, 0, 1, 1], [], []>} : vector<2x192xf32>, vector<192x3xf32>, vector<2x3xf32> -> vector<2x3xf32>
      %c0_26 = arith.constant 0 : index
      %c0_27 = arith.constant 0 : index
      %28 = vector.load %arg8[%c0_26, %c0_27] : memref<1x3xf32, #tpu.memory_space<vmem>>, vector<1x3xf32>
      %29 = vector.broadcast %28 : vector<1x3xf32> to vector<2x3xf32>
      %30 = arith.addf %27, %29 : vector<2x3xf32>
      %c0_28 = arith.constant 0 : index
      %c0_29 = arith.constant 0 : index
      %31 = vector.load %arg9[%c0_28, %c0_29] : memref<2x3xf32, #tpu.memory_space<vmem>>, vector<2x3xf32>
      tpu.vector_store %arg9[%c0_28, %c0_29], %30 {strides = array<i32>} : memref<2x3xf32, #tpu.memory_space<vmem>>, vector<2x3xf32>,
    } else {
    }
    return
  }
  func.func @transform_0(%arg0: i32, %arg1: i32) -> (i32, i32, i32) {
    %c0_i32 = arith.constant 0 : i32
    %c0_i32_0 = arith.constant 0 : i32
    return %arg0, %arg1, %c0_i32 : i32, i32, i32
  }
  func.func @transform_1(%arg0: i32, %arg1: i32) -> (i32, i32) {
    %c0_i32 = arith.constant 0 : i32
    %c0_i32_0 = arith.constant 0 : i32
    %c0_i32_1 = arith.constant 0 : i32
    return %c0_i32, %c0_i32_0 : i32, i32
  }
  func.func @transform_2(%arg0: i32, %arg1: i32) -> (i32, i32) {
    %c0_i32 = arith.constant 0 : i32
    %c0_i32_0 = arith.constant 0 : i32
    %c0_i32_1 = arith.constant 0 : i32
    return %c0_i32, %c0_i32_0 : i32, i32
  }
  func.func @transform_3(%arg0: i32, %arg1: i32) -> (i32, i32) {
    %c0_i32 = arith.constant 0 : i32
    %c0_i32_0 = arith.constant 0 : i32
    %c0_i32_1 = arith.constant 0 : i32
    return %c0_i32, %c0_i32_0 : i32, i32
  }
  func.func @transform_4(%arg0: i32, %arg1: i32) -> (i32, i32) {
    %c0_i32 = arith.constant 0 : i32
    %c0_i32_0 = arith.constant 0 : i32
    %c0_i32_1 = arith.constant 0 : i32
    return %c0_i32, %c0_i32_0 : i32, i32
  }
  func.func @transform_5(%arg0: i32, %arg1: i32) -> (i32, i32) {
    %c0_i32 = arith.constant 0 : i32
    %c0_i32_0 = arith.constant 0 : i32
    %c0_i32_1 = arith.constant 0 : i32
    return %c0_i32, %c0_i32_0 : i32, i32
  }
  func.func @transform_6(%arg0: i32, %arg1: i32) -> (i32, i32) {
    %c0_i32 = arith.constant 0 : i32
    %c0_i32_0 = arith.constant 0 : i32
    %c0_i32_1 = arith.constant 0 : i32
    return %c0_i32, %c0_i32_0 : i32, i32
  }
  func.func @transform_7(%arg0: i32, %arg1: i32) -> (i32, i32) {
    %c0_i32 = arith.constant 0 : i32
    %c0_i32_0 = arith.constant 0 : i32
    return %arg0, %c0_i32 : i32, i32
  }
}

</mosaic_0001>

<llo_original>
// kernel: tpu_custom_call.1
$region0: #{tpu_custom_call.1}
  #allocation0 [shape = 'u32[]', space=smem, size = 0x4, offset = 0x4, fixed_abs, tag = 'smem constant byte address 0x4 - core index']
  #allocation1 [shape = 'u32[144,128]{1,0:T(1,128)}', space=vmem, size = 0x12000, scoped, tag = 'internal scratch']
  #allocation2 [shape = 'f32[2,32]{1,0:T(2,128)}', space=vmem, size = 0x400, scoped, tag = 'scratch operand']
  %s0 = inlined_call_operand.vmem [shape: f32[2,8,32], index: 0, kind: input, shape index: {}]
  %s1 = inlined_call_operand.vmem [shape: f32[32,768], index: 1, kind: input, shape index: {}]
  %s2 = inlined_call_operand.vmem [shape: f32[1,768], index: 2, kind: input, shape index: {}]
  %s3 = inlined_call_operand.vmem [shape: f32[768,192], index: 3, kind: input, shape index: {}]
  %s4 = inlined_call_operand.vmem [shape: f32[1,192], index: 4, kind: input, shape index: {}]
  %s5 = inlined_call_operand.vmem [shape: f32[192,3], index: 5, kind: input, shape index: {}]
  %s6 = inlined_call_operand.vmem [shape: f32[1,3], index: 6, kind: input, shape index: {}]
  %s7 = inlined_call_operand.hbm [shape: f32[2,3], index: 7, kind: output, shape index: {}]
  %s8 = sld [smem:[#allocation0]]
  $region46: #{tpu_custom_call.1} parent=0
    _
  %s10 = ssub.s32 1, %s8
  %s11 = scalar_select 0, %s10, %s8
  $region1: #{tpu_custom_call.1} parent=0
    #allocation3 [shape = 'u8[1024]{0}', space=vmem, size = 0x400, scoped, tag = 'output window, operand 0, single buffered']
    #allocation4 [shape = 's32[1]{0}', space=sflag, size = 0x4, scoped, tag = 'scoped memory for tpu_custom_call.1']
    %12 = vsyncpa [#allocation4], 0
    // Predicated region
    $region2: #{tpu_custom_call.1} parent=1 // pred_check
      _
    $region3: #{tpu_custom_call.1} parent=1 // pred_check_branch
      %14 = sbr.rel (0) target = $region5
    $region4: #{tpu_custom_call.1} parent=1 // pred_region
      _
    $region5: #{tpu_custom_call.1} parent=1 // pred_fallthru
      _
    // Predicated region
    $region6: #{tpu_custom_call.1} parent=1 // pred_check
      _
    $region7: #{tpu_custom_call.1} parent=1 // pred_check_branch
      %16 = sbr.rel (0) target = $region9
    $region8: #{tpu_custom_call.1} parent=1 // pred_region
      _
    $region9: #{tpu_custom_call.1} parent=1 // pred_fallthru
      _
    // Predicated region
    $region10: #{tpu_custom_call.1} parent=1 // pred_check
      _
    $region11: #{tpu_custom_call.1} parent=1 // pred_check_branch
      %18 = sbr.rel (0) target = $region13
    $region12: #{tpu_custom_call.1} parent=1 // pred_region
      _
    $region13: #{tpu_custom_call.1} parent=1 // pred_fallthru
      _
    // Predicated region
    $region14: #{tpu_custom_call.1} parent=1 // pred_check
      _
    $region15: #{tpu_custom_call.1} parent=1 // pred_check_branch
      %20 = sbr.rel (0) target = $region17
    $region16: #{tpu_custom_call.1} parent=1 // pred_region
      _
    $region17: #{tpu_custom_call.1} parent=1 // pred_fallthru
      _
    // Predicated region
    $region18: #{tpu_custom_call.1} parent=1 // pred_check
      _
    $region19: #{tpu_custom_call.1} parent=1 // pred_check_branch
      %22 = sbr.rel (0) target = $region21
    $region20: #{tpu_custom_call.1} parent=1 // pred_region
      _
    $region21: #{tpu_custom_call.1} parent=1 // pred_fallthru
      _
    // Predicated region
    $region22: #{tpu_custom_call.1} parent=1 // pred_check
      _
    $region23: #{tpu_custom_call.1} parent=1 // pred_check_branch
      %24 = sbr.rel (0) target = $region25
    $region24: #{tpu_custom_call.1} parent=1 // pred_region
      _
    $region25: #{tpu_custom_call.1} parent=1 // pred_fallthru
      _
    // Predicated region
    $region26: #{tpu_custom_call.1} parent=1 // pred_check
      _
    $region27: #{tpu_custom_call.1} parent=1 // pred_check_branch
      %26 = sbr.rel (0) target = $region29
    $region28: #{tpu_custom_call.1} parent=1 // pred_region
      _
    $region29: #{tpu_custom_call.1} parent=1 // pred_fallthru
      _
    %p27 = scmp.eq.s32.totalorder 0, 0
    // Predicated region
    $region30: #{tpu_custom_call.1} parent=1 // pred_check
      %p28 = pneg %p27
    $region31: #{tpu_custom_call.1} parent=1 // pred_check_branch
      %30 = sbr.rel (%p28) target = $region33
    $region32: #{tpu_custom_call.1} parent=1 // pred_region
      %vm31 = vcmask 254976
      %32 = vst.msk [vmem:[#allocation2] sm:$0x3] %vm31, 0.0
    $region33: #{tpu_custom_call.1} parent=1 // pred_fallthru
      _
    %v33 = vld [vmem:[#allocation2] sm:$0x3]
    %v34 = vld [vmem:[%s0] sm:$0xff]
    %v35 = vld [vmem:[%s0 + $0x8] sm:$0xff]
    %vm36 = vcmask 261120
    %v37 = vsel %vm36, %v34, 0.0
    %v38 = vrot.slane %v37, 4
    %v39 = vadd.f32 %v37, %v38
    %v40 = vrot.slane %v39, 2
    %v41 = vadd.f32 %v39, %v40
    %v42 = vrot.slane %v41, 1
    %v43 = vadd.f32 %v41, %v42
    %v44 = vsel %vm36, %v35, 0.0
    %v45 = vrot.slane %v44, 4
    %v46 = vadd.f32 %v44, %v45
    %v47 = vrot.slane %v46, 2
    %v48 = vadd.f32 %v46, %v47
    %v49 = vrot.slane %v48, 1
    %v50 = vadd.f32 %v48, %v49
    %vm53 = vcmask 1041409
    %v54 = vsel %vm53, %v50, %v43
    %v56 = vadd.f32 %v33, %v54
    %vm57 = vcmask 254976
    %58 = vst.msk [vmem:[#allocation2] sm:$0x3] %vm57, %v56
    // Predicated region
    $region34: #{tpu_custom_call.1} parent=1 // pred_check
      %p59 = pneg %p27
    $region35: #{tpu_custom_call.1} parent=1 // pred_check_branch
      %61 = sbr.rel (%p59) target = $region37
    $region36: #{tpu_custom_call.1} parent=1 // pred_region
      %v62 = vld [vmem:[#allocation2] sm:$0x3]
      %v63 = vmul.f32 %v62, 0.125
      %v64 = vld [vmem:[%s1] sm:$0xff]
      %v65 = vld [vmem:[%s1 + $0x8] sm:$0xff]
      %v66 = vld [vmem:[%s1 + $0x10] sm:$0xff]
      %v67 = vld [vmem:[%s1 + $0x18] sm:$0xff]
      %v68 = vld [vmem:[%s1 + $0x20] sm:$0xff]
      %v69 = vld [vmem:[%s1 + $0x28] sm:$0xff]
      %v70 = vld [vmem:[%s1 + $0x30] sm:$0xff]
      %v71 = vld [vmem:[%s1 + $0x38] sm:$0xff]
      %v72 = vld [vmem:[%s1 + $0x40] sm:$0xff]
      %v73 = vld [vmem:[%s1 + $0x48] sm:$0xff]
      %v74 = vld [vmem:[%s1 + $0x50] sm:$0xff]
      %v75 = vld [vmem:[%s1 + $0x58] sm:$0xff]
      %v76 = vld [vmem:[%s1 + $0x60] sm:$0xff]
      %v77 = vld [vmem:[%s1 + $0x68] sm:$0xff]
      %v78 = vld [vmem:[%s1 + $0x70] sm:$0xff]
      %v79 = vld [vmem:[%s1 + $0x78] sm:$0xff]
      %v80 = vld [vmem:[%s1 + $0x80] sm:$0xff]
      %v81 = vld [vmem:[%s1 + $0x88] sm:$0xff]
      %v82 = vld [vmem:[%s1 + $0x90] sm:$0xff]
      %v83 = vld [vmem:[%s1 + $0x98] sm:$0xff]
      %v84 = vld [vmem:[%s1 + $0xa0] sm:$0xff]
      %v85 = vld [vmem:[%s1 + $0xa8] sm:$0xff]
      %v86 = vld [vmem:[%s1 + $0xb0] sm:$0xff]
      %v87 = vld [vmem:[%s1 + $0xb8] sm:$0xff]
      %v88 = vld [vmem:[%s2] sm:$0x3f]
      %v90 = vlaneseq
      %v91 = vshrl.u32 %v90, 7
      %v92 = vsub.s32 0, %v91
      %v93 = vrot.slane %v88, %v92
      %v94 = vlaneseq
      %v95 = vshrl.u32 %v94, 7
      %v96 = vsub.s32 1, %v95
      %v97 = vrot.slane %v88, %v96
      %v98 = vlaneseq
      %v99 = vshrl.u32 %v98, 7
      %v100 = vsub.s32 2, %v99
      %v101 = vrot.slane %v88, %v100
      %v102 = vlaneseq
      %v103 = vshrl.u32 %v102, 7
      %v104 = vsub.s32 3, %v103
      %v105 = vrot.slane %v88, %v104
      %v106 = vlaneseq
      %v107 = vshrl.u32 %v106, 7
      %v108 = vsub.s32 4, %v107
      %v109 = vrot.slane %v88, %v108
      %v110 = vlaneseq
      %v111 = vshrl.u32 %v110, 7
      %v112 = vsub.s32 5, %v111
      %v113 = vrot.slane %v88, %v112
      %v121 = vsel %vm36, %v63, 0
      %123 = vmatprep.subr.mxu0 0.0
      %124 = vmatpush1.msra.mxu0 0.0
      %125 = vmatprep.subr.mxu0 0.0
      %126 = vmatpush1.msra.mxu0 0.0
      %127 = vmatprep.subr.mxu0 0.0
      %128 = vmatpush1.msra.mxu0 0.0
      %129 = vmatprep.subr.mxu0 0.0
      %130 = vmatpush1.msra.mxu0 0.0
      %131 = vmatprep.subr.mxu0 0.0
      %132 = vmatpush1.msra.mxu0 0.0
      %133 = vmatprep.subr.mxu0 0.0
      %134 = vmatpush1.msra.mxu0 0.0
      %135 = vmatprep.subr.mxu0 0.0
      %136 = vmatpush1.msra.mxu0 0.0
      %137 = vmatprep.subr.mxu0 0.0
      %138 = vmatpush1.msra.mxu0 0.0
      %139 = vmatprep.subr.mxu0 0.0
      %140 = vmatpush1.msra.mxu0 0.0
      %141 = vmatprep.subr.mxu0 0.0
      %142 = vmatpush1.msra.mxu0 0.0
      %143 = vmatprep.subr.mxu0 0.0
      %144 = vmatpush1.msra.mxu0 0.0
      %145 = vmatprep.subr.mxu0 0.0
      %146 = vmatpush1.msra.mxu0 0.0
      %147 = vmatprep.subr.mxu0 %v83
      %148 = vmatpush1.msra.mxu0 %v82
      %149 = vmatprep.subr.mxu0 %v77
      %150 = vmatpush1.msra.mxu0 %v76
      %151 = vmatprep.subr.mxu0 %v71
      %152 = vmatpush1.msra.mxu0 %v70
      %153 = vmatprep.subr.mxu0 %v65
      %154 = vmatpush1.msra.mxu0 %v64
      %155 = vmatprep.subr.mxu0 0.0
      %156 = vmatpush2.msra.mxu0 0.0
      %157 = vmatprep.subr.mxu0 0.0
      %158 = vmatpush2.msra.mxu0 0.0
      %159 = vmatprep.subr.mxu0 0.0
      %160 = vmatpush2.msra.mxu0 0.0
      %161 = vmatprep.subr.mxu0 0.0
      %162 = vmatpush2.msra.mxu0 0.0
      %163 = vmatprep.subr.mxu0 0.0
      %164 = vmatpush2.msra.mxu0 0.0
      %165 = vmatprep.subr.mxu0 0.0
      %166 = vmatpush2.msra.mxu0 0.0
      %167 = vmatprep.subr.mxu0 0.0
      %168 = vmatpush2.msra.mxu0 0.0
      %169 = vmatprep.subr.mxu0 0.0
      %170 = vmatpush2.msra.mxu0 0.0
      %171 = vmatprep.subr.mxu0 0.0
      %172 = vmatpush2.msra.mxu0 0.0
      %173 = vmatprep.subr.mxu0 0.0
      %174 = vmatpush2.msra.mxu0 0.0
      %175 = vmatprep.subr.mxu0 0.0
      %176 = vmatpush2.msra.mxu0 0.0
      %177 = vmatprep.subr.mxu0 0.0
      %178 = vmatpush2.msra.mxu0 0.0
      %179 = vmatprep.subr.mxu0 0.0
      %180 = vmatpush2.msra.mxu0 0.0
      %181 = vmatprep.subr.mxu0 0.0
      %182 = vmatpush2.msra.mxu0 0.0
      %183 = vmatprep.subr.mxu0 0.0
      %184 = vmatpush2.msra.mxu0 0.0
      %185 = vmatprep.subr.mxu0 0.0
      %186 = vmatpush2.msra.mxu0 0.0
      %187 = vmatprep.mubr.f32.mxu0 0.0
      %188 = vmatmul.mubr.f32.gmra.mxu0 %v121
      %v189 = vpop.f32.mrf.mxu0
      %v190 = vadd.f32 %v93, %v189
      %v191 = vpop.f32.mrf.mxu0
      %v192 = vadd.f32 %v97, %v191
      %193 = vdwg.mxu0
      %194 = vmatprep.subr.mxu0 0.0
      %195 = vmatpush1.msra.mxu0 0.0
      %196 = vmatprep.subr.mxu0 0.0
      %197 = vmatpush1.msra.mxu0 0.0
      %198 = vmatprep.subr.mxu0 0.0
      %199 = vmatpush1.msra.mxu0 0.0
      %200 = vmatprep.subr.mxu0 0.0
      %201 = vmatpush1.msra.mxu0 0.0
      %202 = vmatprep.subr.mxu0 0.0
      %203 = vmatpush1.msra.mxu0 0.0
      %204 = vmatprep.subr.mxu0 0.0
      %205 = vmatpush1.msra.mxu0 0.0
      %206 = vmatprep.subr.mxu0 0.0
      %207 = vmatpush1.msra.mxu0 0.0
      %208 = vmatprep.subr.mxu0 0.0
      %209 = vmatpush1.msra.mxu0 0.0
      %210 = vmatprep.subr.mxu0 0.0
      %211 = vmatpush1.msra.mxu0 0.0
      %212 = vmatprep.subr.mxu0 0.0
      %213 = vmatpush1.msra.mxu0 0.0
      %214 = vmatprep.subr.mxu0 0.0
      %215 = vmatpush1.msra.mxu0 0.0
      %216 = vmatprep.subr.mxu0 0.0
      %217 = vmatpush1.msra.mxu0 0.0
      %218 = vmatprep.subr.mxu0 %v85
      %219 = vmatpush1.msra.mxu0 %v84
      %220 = vmatprep.subr.mxu0 %v79
      %221 = vmatpush1.msra.mxu0 %v78
      %222 = vmatprep.subr.mxu0 %v73
      %223 = vmatpush1.msra.mxu0 %v72
      %224 = vmatprep.subr.mxu0 %v67
      %225 = vmatpush1.msra.mxu0 %v66
      %226 = vmatprep.subr.mxu0 0.0
      %227 = vmatpush2.msra.mxu0 0.0
      %228 = vmatprep.subr.mxu0 0.0
      %229 = vmatpush2.msra.mxu0 0.0
      %230 = vmatprep.subr.mxu0 0.0
      %231 = vmatpush2.msra.mxu0 0.0
      %232 = vmatprep.subr.mxu0 0.0
      %233 = vmatpush2.msra.mxu0 0.0
      %234 = vmatprep.subr.mxu0 0.0
      %235 = vmatpush2.msra.mxu0 0.0
      %236 = vmatprep.subr.mxu0 0.0
      %237 = vmatpush2.msra.mxu0 0.0
      %238 = vmatprep.subr.mxu0 0.0
      %239 = vmatpush2.msra.mxu0 0.0
      %240 = vmatprep.subr.mxu0 0.0
      %241 = vmatpush2.msra.mxu0 0.0
      %242 = vmatprep.subr.mxu0 0.0
      %243 = vmatpush2.msra.mxu0 0.0
      %244 = vmatprep.subr.mxu0 0.0
      %245 = vmatpush2.msra.mxu0 0.0
      %246 = vmatprep.subr.mxu0 0.0
      %247 = vmatpush2.msra.mxu0 0.0
      %248 = vmatprep.subr.mxu0 0.0
      %249 = vmatpush2.msra.mxu0 0.0
      %250 = vmatprep.subr.mxu0 0.0
      %251 = vmatpush2.msra.mxu0 0.0
      %252 = vmatprep.subr.mxu0 0.0
      %253 = vmatpush2.msra.mxu0 0.0
      %254 = vmatprep.subr.mxu0 0.0
      %255 = vmatpush2.msra.mxu0 0.0
      %256 = vmatprep.subr.mxu0 0.0
      %257 = vmatpush2.msra.mxu0 0.0
      %258 = vmatprep.mubr.f32.mxu0 0.0
      %259 = vmatmul.mubr.f32.gmra.mxu0 %v121
      %v260 = vpop.f32.mrf.mxu0
      %v261 = vadd.f32 %v101, %v260
      %v262 = vpop.f32.mrf.mxu0
      %v263 = vadd.f32 %v105, %v262
      %264 = vdwg.mxu0
      %265 = vmatprep.subr.mxu0 0.0
      %266 = vmatpush1.msra.mxu0 0.0
      %267 = vmatprep.subr.mxu0 0.0
      %268 = vmatpush1.msra.mxu0 0.0
      %269 = vmatprep.subr.mxu0 0.0
      %270 = vmatpush1.msra.mxu0 0.0
      %271 = vmatprep.subr.mxu0 0.0
      %272 = vmatpush1.msra.mxu0 0.0
      %273 = vmatprep.subr.mxu0 0.0
      %274 = vmatpush1.msra.mxu0 0.0
      %275 = vmatprep.subr.mxu0 0.0
      %276 = vmatpush1.msra.mxu0 0.0
      %277 = vmatprep.subr.mxu0 0.0
      %278 = vmatpush1.msra.mxu0 0.0
      %279 = vmatprep.subr.mxu0 0.0
      %280 = vmatpush1.msra.mxu0 0.0
      %281 = vmatprep.subr.mxu0 0.0
      %282 = vmatpush1.msra.mxu0 0.0
      %283 = vmatprep.subr.mxu0 0.0
      %284 = vmatpush1.msra.mxu0 0.0
      %285 = vmatprep.subr.mxu0 0.0
      %286 = vmatpush1.msra.mxu0 0.0
      %287 = vmatprep.subr.mxu0 0.0
      %288 = vmatpush1.msra.mxu0 0.0
      %289 = vmatprep.subr.mxu0 %v87
      %290 = vmatpush1.msra.mxu0 %v86
      %291 = vmatprep.subr.mxu0 %v81
      %292 = vmatpush1.msra.mxu0 %v80
      %293 = vmatprep.subr.mxu0 %v75
      %294 = vmatpush1.msra.mxu0 %v74
      %295 = vmatprep.subr.mxu0 %v69
      %296 = vmatpush1.msra.mxu0 %v68
      %297 = vmatprep.subr.mxu0 0.0
      %298 = vmatpush2.msra.mxu0 0.0
      %299 = vmatprep.subr.mxu0 0.0
      %300 = vmatpush2.msra.mxu0 0.0
      %301 = vmatprep.subr.mxu0 0.0
      %302 = vmatpush2.msra.mxu0 0.0
      %303 = vmatprep.subr.mxu0 0.0
      %304 = vmatpush2.msra.mxu0 0.0
      %305 = vmatprep.subr.mxu0 0.0
      %306 = vmatpush2.msra.mxu0 0.0
      %307 = vmatprep.subr.mxu0 0.0
      %308 = vmatpush2.msra.mxu0 0.0
      %309 = vmatprep.subr.mxu0 0.0
      %310 = vmatpush2.msra.mxu0 0.0
      %311 = vmatprep.subr.mxu0 0.0
      %312 = vmatpush2.msra.mxu0 0.0
      %313 = vmatprep.subr.mxu0 0.0
      %314 = vmatpush2.msra.mxu0 0.0
      %315 = vmatprep.subr.mxu0 0.0
      %316 = vmatpush2.msra.mxu0 0.0
      %317 = vmatprep.subr.mxu0 0.0
      %318 = vmatpush2.msra.mxu0 0.0
      %319 = vmatprep.subr.mxu0 0.0
      %320 = vmatpush2.msra.mxu0 0.0
      %321 = vmatprep.subr.mxu0 0.0
      %322 = vmatpush2.msra.mxu0 0.0
      %323 = vmatprep.subr.mxu0 0.0
      %324 = vmatpush2.msra.mxu0 0.0
      %325 = vmatprep.subr.mxu0 0.0
      %326 = vmatpush2.msra.mxu0 0.0
      %327 = vmatprep.subr.mxu0 0.0
      %328 = vmatpush2.msra.mxu0 0.0
      %329 = vmatprep.mubr.f32.mxu0 0.0
      %330 = vmatmul.mubr.f32.gmra.mxu0 %v121
      %v331 = vpop.f32.mrf.mxu0
      %v332 = vadd.f32 %v109, %v331
      %v333 = vpop.f32.mrf.mxu0
      %v334 = vadd.f32 %v113, %v333
      %335 = vdwg.mxu0
      %v336 = vmax.f32 %v190, 0.0
      %v337 = vmax.f32 %v192, 0.0
      %v338 = vmax.f32 %v261, 0.0
      %v339 = vmax.f32 %v263, 0.0
      %v340 = vmax.f32 %v332, 0.0
      %v341 = vmax.f32 %v334, 0.0
      %v342 = vld [vmem:[%s3] sm:$0xff]
      %v343 = vld [vmem:[%s3 + $0x8] sm:$0xff]
      %v344 = vld [vmem:[%s3 + $0x10] sm:$0xff]
      %v345 = vld [vmem:[%s3 + $0x18] sm:$0xff]
      %v346 = vld [vmem:[%s3 + $0x20] sm:$0xff]
      %v347 = vld [vmem:[%s3 + $0x28] sm:$0xff]
      %v348 = vld [vmem:[%s3 + $0x30] sm:$0xff]
      %v349 = vld [vmem:[%s3 + $0x38] sm:$0xff]
      %v350 = vld [vmem:[%s3 + $0x40] sm:$0xff]
      %v351 = vld [vmem:[%s3 + $0x48] sm:$0xff]
      %v352 = vld [vmem:[%s3 + $0x50] sm:$0xff]
      %v353 = vld [vmem:[%s3 + $0x58] sm:$0xff]
      %v354 = vld [vmem:[%s3 + $0x60] sm:$0xff]
      %v355 = vld [vmem:[%s3 + $0x68] sm:$0xff]
      %v356 = vld [vmem:[%s3 + $0x70] sm:$0xff]
      %v357 = vld [vmem:[%s3 + $0x78] sm:$0xff]
      %v358 = vld [vmem:[%s3 + $0x80] sm:$0xff]
      %v359 = vld [vmem:[%s3 + $0x88] sm:$0xff]
      %v360 = vld [vmem:[%s3 + $0x90] sm:$0xff]
      %v361 = vld [vmem:[%s3 + $0x98] sm:$0xff]
      %v362 = vld [vmem:[%s3 + $0xa0] sm:$0xff]
      %v363 = vld [vmem:[%s3 + $0xa8] sm:$0xff]
      %v364 = vld [vmem:[%s3 + $0xb0] sm:$0xff]
      %v365 = vld [vmem:[%s3 + $0xb8] sm:$0xff]
      %v366 = vld [vmem:[%s3 + $0xc0] sm:$0xff]
      %v367 = vld [vmem:[%s3 + $0xc8] sm:$0xff]
      %v368 = vld [vmem:[%s3 + $0xd0] sm:$0xff]
      %v369 = vld [vmem:[%s3 + $0xd8] sm:$0xff]
      %v370 = vld [vmem:[%s3 + $0xe0] sm:$0xff]
      %v371 = vld [vmem:[%s3 + $0xe8] sm:$0xff]
      %v372 = vld [vmem:[%s3 + $0xf0] sm:$0xff]
      %v373 = vld [vmem:[%s3 + $0xf8] sm:$0xff]
      %v374 = vld [vmem:[%s3 + $0x100] sm:$0xff]
      %v375 = vld [vmem:[%s3 + $0x108] sm:$0xff]
      %v376 = vld [vmem:[%s3 + $0x110] sm:$0xff]
      %v377 = vld [vmem:[%s3 + $0x118] sm:$0xff]
      %v378 = vld [vmem:[%s3 + $0x120] sm:$0xff]
      %v379 = vld [vmem:[%s3 + $0x128] sm:$0xff]
      %v380 = vld [vmem:[%s3 + $0x130] sm:$0xff]
      %v381 = vld [vmem:[%s3 + $0x138] sm:$0xff]
      %v382 = vld [vmem:[%s3 + $0x140] sm:$0xff]
      %v383 = vld [vmem:[%s3 + $0x148] sm:$0xff]
      %v384 = vld [vmem:[%s3 + $0x150] sm:$0xff]
      %v385 = vld [vmem:[%s3 + $0x158] sm:$0xff]
      %v386 = vld [vmem:[%s3 + $0x160] sm:$0xff]
      %v387 = vld [vmem:[%s3 + $0x168] sm:$0xff]
      %v388 = vld [vmem:[%s3 + $0x170] sm:$0xff]
      %v389 = vld [vmem:[%s3 + $0x178] sm:$0xff]
      %v390 = vld [vmem:[%s3 + $0x180] sm:$0xff]
      %v391 = vld [vmem:[%s3 + $0x188] sm:$0xff]
      %v392 = vld [vmem:[%s3 + $0x190] sm:$0xff]
      %v393 = vld [vmem:[%s3 + $0x198] sm:$0xff]
      %v394 = vld [vmem:[%s3 + $0x1a0] sm:$0xff]
      %v395 = vld [vmem:[%s3 + $0x1a8] sm:$0xff]
      %v396 = vld [vmem:[%s3 + $0x1b0] sm:$0xff]
      %v397 = vld [vmem:[%s3 + $0x1b8] sm:$0xff]
      %v398 = vld [vmem:[%s3 + $0x1c0] sm:$0xff]
      %v399 = vld [vmem:[%s3 + $0x1c8] sm:$0xff]
      %v400 = vld [vmem:[%s3 + $0x1d0] sm:$0xff]
      %v401 = vld [vmem:[%s3 + $0x1d8] sm:$0xff]
      %v402 = vld [vmem:[%s3 + $0x1e0] sm:$0xff]
      %v403 = vld [vmem:[%s3 + $0x1e8] sm:$0xff]
      %v404 = vld [vmem:[%s3 + $0x1f0] sm:$0xff]
      %v405 = vld [vmem:[%s3 + $0x1f8] sm:$0xff]
      %v406 = vld [vmem:[%s3 + $0x200] sm:$0xff]
      %v407 = vld [vmem:[%s3 + $0x208] sm:$0xff]
      %v408 = vld [vmem:[%s3 + $0x210] sm:$0xff]
      %v409 = vld [vmem:[%s3 + $0x218] sm:$0xff]
      %v410 = vld [vmem:[%s3 + $0x220] sm:$0xff]
      %v411 = vld [vmem:[%s3 + $0x228] sm:$0xff]
      %v412 = vld [vmem:[%s3 + $0x230] sm:$0xff]
      %v413 = vld [vmem:[%s3 + $0x238] sm:$0xff]
      %v414 = vld [vmem:[%s3 + $0x240] sm:$0xff]
      %v415 = vld [vmem:[%s3 + $0x248] sm:$0xff]
      %v416 = vld [vmem:[%s3 + $0x250] sm:$0xff]
      %v417 = vld [vmem:[%s3 + $0x258] sm:$0xff]
      %v418 = vld [vmem:[%s3 + $0x260] sm:$0xff]
      %v419 = vld [vmem:[%s3 + $0x268] sm:$0xff]
      %v420 = vld [vmem:[%s3 + $0x270] sm:$0xff]
      %v421 = vld [vmem:[%s3 + $0x278] sm:$0xff]
      %v422 = vld [vmem:[%s3 + $0x280] sm:$0xff]
      %v423 = vld [vmem:[%s3 + $0x288] sm:$0xff]
      %v424 = vld [vmem:[%s3 + $0x290] sm:$0xff]
      %v425 = vld [vmem:[%s3 + $0x298] sm:$0xff]
      %v426 = vld [vmem:[%s3 + $0x2a0] sm:$0xff]
      %v427 = vld [vmem:[%s3 + $0x2a8] sm:$0xff]
      %v428 = vld [vmem:[%s3 + $0x2b0] sm:$0xff]
      %v429 = vld [vmem:[%s3 + $0x2b8] sm:$0xff]
      %v430 = vld [vmem:[%s3 + $0x2c0] sm:$0xff]
      %v431 = vld [vmem:[%s3 + $0x2c8] sm:$0xff]
      %v432 = vld [vmem:[%s3 + $0x2d0] sm:$0xff]
      %v433 = vld [vmem:[%s3 + $0x2d8] sm:$0xff]
      %v434 = vld [vmem:[%s3 + $0x2e0] sm:$0xff]
      %v435 = vld [vmem:[%s3 + $0x2e8] sm:$0xff]
      %v436 = vld [vmem:[%s3 + $0x2f0] sm:$0xff]
      %v437 = vld [vmem:[%s3 + $0x2f8] sm:$0xff]
      %v438 = vld [vmem:[%s3 + $0x300] sm:$0xff]
      %v439 = vld [vmem:[%s3 + $0x308] sm:$0xff]
      %v440 = vld [vmem:[%s3 + $0x310] sm:$0xff]
      %v441 = vld [vmem:[%s3 + $0x318] sm:$0xff]
      %v442 = vld [vmem:[%s3 + $0x320] sm:$0xff]
      %v443 = vld [vmem:[%s3 + $0x328] sm:$0xff]
      %v444 = vld [vmem:[%s3 + $0x330] sm:$0xff]
      %v445 = vld [vmem:[%s3 + $0x338] sm:$0xff]
      %v446 = vld [vmem:[%s3 + $0x340] sm:$0xff]
      %v447 = vld [vmem:[%s3 + $0x348] sm:$0xff]
      %v448 = vld [vmem:[%s3 + $0x350] sm:$0xff]
      %v449 = vld [vmem:[%s3 + $0x358] sm:$0xff]
      %v450 = vld [vmem:[%s3 + $0x360] sm:$0xff]
      %v451 = vld [vmem:[%s3 + $0x368] sm:$0xff]
      %v452 = vld [vmem:[%s3 + $0x370] sm:$0xff]
      %v453 = vld [vmem:[%s3 + $0x378] sm:$0xff]
      %v454 = vld [vmem:[%s3 + $0x380] sm:$0xff]
      %v455 = vld [vmem:[%s3 + $0x388] sm:$0xff]
      %v456 = vld [vmem:[%s3 + $0x390] sm:$0xff]
      %v457 = vld [vmem:[%s3 + $0x398] sm:$0xff]
      %v458 = vld [vmem:[%s3 + $0x3a0] sm:$0xff]
      %v459 = vld [vmem:[%s3 + $0x3a8] sm:$0xff]
      %v460 = vld [vmem:[%s3 + $0x3b0] sm:$0xff]
      %v461 = vld [vmem:[%s3 + $0x3b8] sm:$0xff]
      %v462 = vld [vmem:[%s3 + $0x3c0] sm:$0xff]
      %v463 = vld [vmem:[%s3 + $0x3c8] sm:$0xff]
      %v464 = vld [vmem:[%s3 + $0x3d0] sm:$0xff]
      %v465 = vld [vmem:[%s3 + $0x3d8] sm:$0xff]
      %v466 = vld [vmem:[%s3 + $0x3e0] sm:$0xff]
      %v467 = vld [vmem:[%s3 + $0x3e8] sm:$0xff]
      %v468 = vld [vmem:[%s3 + $0x3f0] sm:$0xff]
      %v469 = vld [vmem:[%s3 + $0x3f8] sm:$0xff]
      %v470 = vld [vmem:[%s3 + $0x400] sm:$0xff]
      %v471 = vld [vmem:[%s3 + $0x408] sm:$0xff]
      %v472 = vld [vmem:[%s3 + $0x410] sm:$0xff]
      %v473 = vld [vmem:[%s3 + $0x418] sm:$0xff]
      %v474 = vld [vmem:[%s3 + $0x420] sm:$0xff]
      %v475 = vld [vmem:[%s3 + $0x428] sm:$0xff]
      %v476 = vld [vmem:[%s3 + $0x430] sm:$0xff]
      %v477 = vld [vmem:[%s3 + $0x438] sm:$0xff]
      %v478 = vld [vmem:[%s3 + $0x440] sm:$0xff]
      %v479 = vld [vmem:[%s3 + $0x448] sm:$0xff]
      %v480 = vld [vmem:[%s3 + $0x450] sm:$0xff]
      %v481 = vld [vmem:[%s3 + $0x458] sm:$0xff]
      %v482 = vld [vmem:[%s3 + $0x460] sm:$0xff]
      %v483 = vld [vmem:[%s3 + $0x468] sm:$0xff]
      %v484 = vld [vmem:[%s3 + $0x470] sm:$0xff]
      %v485 = vld [vmem:[%s3 + $0x478] sm:$0xff]
      %v486 = vld [vmem:[%s3 + $0x480] sm:$0xff]
      %v487 = vld [vmem:[%s3 + $0x488] sm:$0xff]
      %v488 = vld [vmem:[%s3 + $0x490] sm:$0xff]
      %v489 = vld [vmem:[%s3 + $0x498] sm:$0xff]
      %v490 = vld [vmem:[%s3 + $0x4a0] sm:$0xff]
      %v491 = vld [vmem:[%s3 + $0x4a8] sm:$0xff]
      %v492 = vld [vmem:[%s3 + $0x4b0] sm:$0xff]
      %v493 = vld [vmem:[%s3 + $0x4b8] sm:$0xff]
      %v494 = vld [vmem:[%s3 + $0x4c0] sm:$0xff]
      %v495 = vld [vmem:[%s3 + $0x4c8] sm:$0xff]
      %v496 = vld [vmem:[%s3 + $0x4d0] sm:$0xff]
      %v497 = vld [vmem:[%s3 + $0x4d8] sm:$0xff]
      %v498 = vld [vmem:[%s3 + $0x4e0] sm:$0xff]
      %v499 = vld [vmem:[%s3 + $0x4e8] sm:$0xff]
      %v500 = vld [vmem:[%s3 + $0x4f0] sm:$0xff]
      %v501 = vld [vmem:[%s3 + $0x4f8] sm:$0xff]
      %v502 = vld [vmem:[%s3 + $0x500] sm:$0xff]
      %v503 = vld [vmem:[%s3 + $0x508] sm:$0xff]
      %v504 = vld [vmem:[%s3 + $0x510] sm:$0xff]
      %v505 = vld [vmem:[%s3 + $0x518] sm:$0xff]
      %v506 = vld [vmem:[%s3 + $0x520] sm:$0xff]
      %v507 = vld [vmem:[%s3 + $0x528] sm:$0xff]
      %v508 = vld [vmem:[%s3 + $0x530] sm:$0xff]
      %v509 = vld [vmem:[%s3 + $0x538] sm:$0xff]
      %v510 = vld [vmem:[%s3 + $0x540] sm:$0xff]
      %v511 = vld [vmem:[%s3 + $0x548] sm:$0xff]
      %v512 = vld [vmem:[%s3 + $0x550] sm:$0xff]
      %v513 = vld [vmem:[%s3 + $0x558] sm:$0xff]
      %v514 = vld [vmem:[%s3 + $0x560] sm:$0xff]
      %v515 = vld [vmem:[%s3 + $0x568] sm:$0xff]
      %v516 = vld [vmem:[%s3 + $0x570] sm:$0xff]
      %v517 = vld [vmem:[%s3 + $0x578] sm:$0xff]
      %v518 = vld [vmem:[%s3 + $0x580] sm:$0xff]
      %v519 = vld [vmem:[%s3 + $0x588] sm:$0xff]
      %v520 = vld [vmem:[%s3 + $0x590] sm:$0xff]
      %v521 = vld [vmem:[%s3 + $0x598] sm:$0xff]
      %v522 = vld [vmem:[%s3 + $0x5a0] sm:$0xff]
      %v523 = vld [vmem:[%s3 + $0x5a8] sm:$0xff]
      %v524 = vld [vmem:[%s3 + $0x5b0] sm:$0xff]
      %v525 = vld [vmem:[%s3 + $0x5b8] sm:$0xff]
      %v526 = vld [vmem:[%s3 + $0x5c0] sm:$0xff]
      %v527 = vld [vmem:[%s3 + $0x5c8] sm:$0xff]
      %v528 = vld [vmem:[%s3 + $0x5d0] sm:$0xff]
      %v529 = vld [vmem:[%s3 + $0x5d8] sm:$0xff]
      %v530 = vld [vmem:[%s3 + $0x5e0] sm:$0xff]
      %v531 = vld [vmem:[%s3 + $0x5e8] sm:$0xff]
      %v532 = vld [vmem:[%s3 + $0x5f0] sm:$0xff]
      %v533 = vld [vmem:[%s3 + $0x5f8] sm:$0xff]
      %v534 = vld [vmem:[%s4] sm:$0x3]
      %v536 = vlaneseq
      %v537 = vshrl.u32 %v536, 7
      %v538 = vsub.s32 0, %v537
      %v539 = vrot.slane %v534, %v538
      %v540 = vlaneseq
      %v541 = vshrl.u32 %v540, 7
      %v542 = vsub.s32 1, %v541
      %v543 = vrot.slane %v534, %v542
      %546 = vmatprep.subr.mxu0 %v373
      %547 = vmatpush1.msra.mxu0 %v372
      %548 = vmatprep.subr.mxu0 %v371
      %549 = vmatpush1.msra.mxu0 %v370
      %550 = vmatprep.subr.mxu0 %v369
      %551 = vmatpush1.msra.mxu0 %v368
      %552 = vmatprep.subr.mxu0 %v367
      %553 = vmatpush1.msra.mxu0 %v366
      %554 = vmatprep.subr.mxu0 %v365
      %555 = vmatpush1.msra.mxu0 %v364
      %556 = vmatprep.subr.mxu0 %v363
      %557 = vmatpush1.msra.mxu0 %v362
      %558 = vmatprep.subr.mxu0 %v361
      %559 = vmatpush1.msra.mxu0 %v360
      %560 = vmatprep.subr.mxu0 %v359
      %561 = vmatpush1.msra.mxu0 %v358
      %562 = vmatprep.subr.mxu0 %v357
      %563 = vmatpush1.msra.mxu0 %v356
      %564 = vmatprep.subr.mxu0 %v355
      %565 = vmatpush1.msra.mxu0 %v354
      %566 = vmatprep.subr.mxu0 %v353
      %567 = vmatpush1.msra.mxu0 %v352
      %568 = vmatprep.subr.mxu0 %v351
      %569 = vmatpush1.msra.mxu0 %v350
      %570 = vmatprep.subr.mxu0 %v349
      %571 = vmatpush1.msra.mxu0 %v348
      %572 = vmatprep.subr.mxu0 %v347
      %573 = vmatpush1.msra.mxu0 %v346
      %574 = vmatprep.subr.mxu0 %v345
      %575 = vmatpush1.msra.mxu0 %v344
      %576 = vmatprep.subr.mxu0 %v343
      %577 = vmatpush1.msra.mxu0 %v342
      %578 = vmatprep.subr.mxu0 %v405
      %579 = vmatpush2.msra.mxu0 %v404
      %580 = vmatprep.subr.mxu0 %v403
      %581 = vmatpush2.msra.mxu0 %v402
      %582 = vmatprep.subr.mxu0 %v401
      %583 = vmatpush2.msra.mxu0 %v400
      %584 = vmatprep.subr.mxu0 %v399
      %585 = vmatpush2.msra.mxu0 %v398
      %586 = vmatprep.subr.mxu0 %v397
      %587 = vmatpush2.msra.mxu0 %v396
      %588 = vmatprep.subr.mxu0 %v395
      %589 = vmatpush2.msra.mxu0 %v394
      %590 = vmatprep.subr.mxu0 %v393
      %591 = vmatpush2.msra.mxu0 %v392
      %592 = vmatprep.subr.mxu0 %v391
      %593 = vmatpush2.msra.mxu0 %v390
      %594 = vmatprep.subr.mxu0 %v389
      %595 = vmatpush2.msra.mxu0 %v388
      %596 = vmatprep.subr.mxu0 %v387
      %597 = vmatpush2.msra.mxu0 %v386
      %598 = vmatprep.subr.mxu0 %v385
      %599 = vmatpush2.msra.mxu0 %v384
      %600 = vmatprep.subr.mxu0 %v383
      %601 = vmatpush2.msra.mxu0 %v382
      %602 = vmatprep.subr.mxu0 %v381
      %603 = vmatpush2.msra.mxu0 %v380
      %604 = vmatprep.subr.mxu0 %v379
      %605 = vmatpush2.msra.mxu0 %v378
      %606 = vmatprep.subr.mxu0 %v377
      %607 = vmatpush2.msra.mxu0 %v376
      %608 = vmatprep.subr.mxu0 %v375
      %609 = vmatpush2.msra.mxu0 %v374
      %610 = vmatprep.mubr.f32.mxu0 %v337
      %611 = vmatmul.mubr.f32.gmra.mxu0 %v336
      %v612 = vpop.f32.mrf.mxu0
      %v613 = vadd.f32 %v539, %v612
      %v614 = vpop.f32.mrf.mxu0
      %v615 = vadd.f32 %v543, %v614
      %616 = vdwg.mxu0
      %617 = vmatprep.subr.mxu0 %v437
      %618 = vmatpush1.msra.mxu0 %v436
      %619 = vmatprep.subr.mxu0 %v435
      %620 = vmatpush1.msra.mxu0 %v434
      %621 = vmatprep.subr.mxu0 %v433
      %622 = vmatpush1.msra.mxu0 %v432
      %623 = vmatprep.subr.mxu0 %v431
      %624 = vmatpush1.msra.mxu0 %v430
      %625 = vmatprep.subr.mxu0 %v429
      %626 = vmatpush1.msra.mxu0 %v428
      %627 = vmatprep.subr.mxu0 %v427
      %628 = vmatpush1.msra.mxu0 %v426
      %629 = vmatprep.subr.mxu0 %v425
      %630 = vmatpush1.msra.mxu0 %v424
      %631 = vmatprep.subr.mxu0 %v423
      %632 = vmatpush1.msra.mxu0 %v422
      %633 = vmatprep.subr.mxu0 %v421
      %634 = vmatpush1.msra.mxu0 %v420
      %635 = vmatprep.subr.mxu0 %v419
      %636 = vmatpush1.msra.mxu0 %v418
      %637 = vmatprep.subr.mxu0 %v417
      %638 = vmatpush1.msra.mxu0 %v416
      %639 = vmatprep.subr.mxu0 %v415
      %640 = vmatpush1.msra.mxu0 %v414
      %641 = vmatprep.subr.mxu0 %v413
      %642 = vmatpush1.msra.mxu0 %v412
      %643 = vmatprep.subr.mxu0 %v411
      %644 = vmatpush1.msra.mxu0 %v410
      %645 = vmatprep.subr.mxu0 %v409
      %646 = vmatpush1.msra.mxu0 %v408
      %647 = vmatprep.subr.mxu0 %v407
      %648 = vmatpush1.msra.mxu0 %v406
      %649 = vmatprep.subr.mxu0 %v469
      %650 = vmatpush2.msra.mxu0 %v468
      %651 = vmatprep.subr.mxu0 %v467
      %652 = vmatpush2.msra.mxu0 %v466
      %653 = vmatprep.subr.mxu0 %v465
      %654 = vmatpush2.msra.mxu0 %v464
      %655 = vmatprep.subr.mxu0 %v463
      %656 = vmatpush2.msra.mxu0 %v462
      %657 = vmatprep.subr.mxu0 %v461
      %658 = vmatpush2.msra.mxu0 %v460
      %659 = vmatprep.subr.mxu0 %v459
      %660 = vmatpush2.msra.mxu0 %v458
      %661 = vmatprep.subr.mxu0 %v457
      %662 = vmatpush2.msra.mxu0 %v456
      %663 = vmatprep.subr.mxu0 %v455
      %664 = vmatpush2.msra.mxu0 %v454
      %665 = vmatprep.subr.mxu0 %v453
      %666 = vmatpush2.msra.mxu0 %v452
      %667 = vmatprep.subr.mxu0 %v451
      %668 = vmatpush2.msra.mxu0 %v450
      %669 = vmatprep.subr.mxu0 %v449
      %670 = vmatpush2.msra.mxu0 %v448
      %671 = vmatprep.subr.mxu0 %v447
      %672 = vmatpush2.msra.mxu0 %v446
      %673 = vmatprep.subr.mxu0 %v445
      %674 = vmatpush2.msra.mxu0 %v444
      %675 = vmatprep.subr.mxu0 %v443
      %676 = vmatpush2.msra.mxu0 %v442
      %677 = vmatprep.subr.mxu0 %v441
      %678 = vmatpush2.msra.mxu0 %v440
      %679 = vmatprep.subr.mxu0 %v439
      %680 = vmatpush2.msra.mxu0 %v438
      %681 = vmatprep.mubr.f32.mxu0 %v339
      %682 = vmatmul.mubr.f32.gmra.mxu0 %v338
      %v683 = vpop.f32.mrf.mxu0
      %v684 = vadd.f32 %v613, %v683
      %v685 = vpop.f32.mrf.mxu0
      %v686 = vadd.f32 %v615, %v685
      %687 = vdwg.mxu0
      %688 = vmatprep.subr.mxu0 %v501
      %689 = vmatpush1.msra.mxu0 %v500
      %690 = vmatprep.subr.mxu0 %v499
      %691 = vmatpush1.msra.mxu0 %v498
      %692 = vmatprep.subr.mxu0 %v497
      %693 = vmatpush1.msra.mxu0 %v496
      %694 = vmatprep.subr.mxu0 %v495
      %695 = vmatpush1.msra.mxu0 %v494
      %696 = vmatprep.subr.mxu0 %v493
      %697 = vmatpush1.msra.mxu0 %v492
      %698 = vmatprep.subr.mxu0 %v491
      %699 = vmatpush1.msra.mxu0 %v490
      %700 = vmatprep.subr.mxu0 %v489
      %701 = vmatpush1.msra.mxu0 %v488
      %702 = vmatprep.subr.mxu0 %v487
      %703 = vmatpush1.msra.mxu0 %v486
      %704 = vmatprep.subr.mxu0 %v485
      %705 = vmatpush1.msra.mxu0 %v484
      %706 = vmatprep.subr.mxu0 %v483
      %707 = vmatpush1.msra.mxu0 %v482
      %708 = vmatprep.subr.mxu0 %v481
      %709 = vmatpush1.msra.mxu0 %v480
      %710 = vmatprep.subr.mxu0 %v479
      %711 = vmatpush1.msra.mxu0 %v478
      %712 = vmatprep.subr.mxu0 %v477
      %713 = vmatpush1.msra.mxu0 %v476
      %714 = vmatprep.subr.mxu0 %v475
      %715 = vmatpush1.msra.mxu0 %v474
      %716 = vmatprep.subr.mxu0 %v473
      %717 = vmatpush1.msra.mxu0 %v472
      %718 = vmatprep.subr.mxu0 %v471
      %719 = vmatpush1.msra.mxu0 %v470
      %720 = vmatprep.subr.mxu0 %v533
      %721 = vmatpush2.msra.mxu0 %v532
      %722 = vmatprep.subr.mxu0 %v531
      %723 = vmatpush2.msra.mxu0 %v530
      %724 = vmatprep.subr.mxu0 %v529
      %725 = vmatpush2.msra.mxu0 %v528
      %726 = vmatprep.subr.mxu0 %v527
      %727 = vmatpush2.msra.mxu0 %v526
      %728 = vmatprep.subr.mxu0 %v525
      %729 = vmatpush2.msra.mxu0 %v524
      %730 = vmatprep.subr.mxu0 %v523
      %731 = vmatpush2.msra.mxu0 %v522
      %732 = vmatprep.subr.mxu0 %v521
      %733 = vmatpush2.msra.mxu0 %v520
      %734 = vmatprep.subr.mxu0 %v519
      %735 = vmatpush2.msra.mxu0 %v518
      %736 = vmatprep.subr.mxu0 %v517
      %737 = vmatpush2.msra.mxu0 %v516
      %738 = vmatprep.subr.mxu0 %v515
      %739 = vmatpush2.msra.mxu0 %v514
      %740 = vmatprep.subr.mxu0 %v513
      %741 = vmatpush2.msra.mxu0 %v512
      %742 = vmatprep.subr.mxu0 %v511
      %743 = vmatpush2.msra.mxu0 %v510
      %744 = vmatprep.subr.mxu0 %v509
      %745 = vmatpush2.msra.mxu0 %v508
      %746 = vmatprep.subr.mxu0 %v507
      %747 = vmatpush2.msra.mxu0 %v506
      %748 = vmatprep.subr.mxu0 %v505
      %749 = vmatpush2.msra.mxu0 %v504
      %750 = vmatprep.subr.mxu0 %v503
      %751 = vmatpush2.msra.mxu0 %v502
      %752 = vmatprep.mubr.f32.mxu0 %v341
      %753 = vmatmul.mubr.f32.gmra.mxu0 %v340
      %v754 = vpop.f32.mrf.mxu0
      %v755 = vadd.f32 %v684, %v754
      %v756 = vpop.f32.mrf.mxu0
      %v757 = vadd.f32 %v686, %v756
      %758 = vdwg.mxu0
      %v759 = vld [vmem:[%s5] sm:$0xff]
      %v760 = vld [vmem:[%s5 + $0x8] sm:$0xff]
      %v761 = vld [vmem:[%s5 + $0x10] sm:$0xff]
      %v762 = vld [vmem:[%s5 + $0x18] sm:$0xff]
      %v763 = vld [vmem:[%s5 + $0x20] sm:$0xff]
      %v764 = vld [vmem:[%s5 + $0x28] sm:$0xff]
      %v765 = vld [vmem:[%s5 + $0x30] sm:$0xff]
      %v766 = vld [vmem:[%s5 + $0x38] sm:$0xff]
      %v767 = vld [vmem:[%s5 + $0x40] sm:$0xff]
      %v768 = vld [vmem:[%s5 + $0x48] sm:$0xff]
      %v769 = vld [vmem:[%s5 + $0x50] sm:$0xff]
      %v770 = vld [vmem:[%s5 + $0x58] sm:$0xff]
      %v771 = vld [vmem:[%s5 + $0x60] sm:$0xff]
      %v772 = vld [vmem:[%s5 + $0x68] sm:$0xff]
      %v773 = vld [vmem:[%s5 + $0x70] sm:$0xff]
      %v774 = vld [vmem:[%s5 + $0x78] sm:$0xff]
      %v775 = vld [vmem:[%s5 + $0x80] sm:$0xff]
      %v776 = vld [vmem:[%s5 + $0x88] sm:$0xff]
      %v777 = vld [vmem:[%s5 + $0x90] sm:$0xff]
      %v778 = vld [vmem:[%s5 + $0x98] sm:$0xff]
      %v779 = vld [vmem:[%s5 + $0xa0] sm:$0xff]
      %v780 = vld [vmem:[%s5 + $0xa8] sm:$0xff]
      %v781 = vld [vmem:[%s5 + $0xb0] sm:$0xff]
      %v782 = vld [vmem:[%s5 + $0xb8] sm:$0xff]
      %v783 = vld [vmem:[%s6] sm:$0x1]
      %v785 = vlaneseq
      %v786 = vshrl.u32 %v785, 7
      %v787 = vsub.s32 0, %v786
      %v788 = vrot.slane %v783, %v787
      %vm790 = vcmask 523264
      %v792 = vsel %vm790, %v757, 0
      %794 = vmatprep.subr.mxu0 0.0
      %795 = vmatpush1.msra.mxu0 %v774
      %796 = vmatprep.subr.mxu0 0.0
      %797 = vmatpush1.msra.mxu0 %v773
      %798 = vmatprep.subr.mxu0 0.0
      %799 = vmatpush1.msra.mxu0 %v772
      %800 = vmatprep.subr.mxu0 0.0
      %801 = vmatpush1.msra.mxu0 %v771
      %802 = vmatprep.subr.mxu0 0.0
      %803 = vmatpush1.msra.mxu0 %v770
      %804 = vmatprep.subr.mxu0 0.0
      %805 = vmatpush1.msra.mxu0 %v769
      %806 = vmatprep.subr.mxu0 0.0
      %807 = vmatpush1.msra.mxu0 %v768
      %808 = vmatprep.subr.mxu0 0.0
      %809 = vmatpush1.msra.mxu0 %v767
      %810 = vmatprep.subr.mxu0 0.0
      %811 = vmatpush1.msra.mxu0 %v766
      %812 = vmatprep.subr.mxu0 0.0
      %813 = vmatpush1.msra.mxu0 %v765
      %814 = vmatprep.subr.mxu0 0.0
      %815 = vmatpush1.msra.mxu0 %v764
      %816 = vmatprep.subr.mxu0 0.0
      %817 = vmatpush1.msra.mxu0 %v763
      %818 = vmatprep.subr.mxu0 0.0
      %819 = vmatpush1.msra.mxu0 %v762
      %820 = vmatprep.subr.mxu0 0.0
      %821 = vmatpush1.msra.mxu0 %v761
      %822 = vmatprep.subr.mxu0 0.0
      %823 = vmatpush1.msra.mxu0 %v760
      %824 = vmatprep.subr.mxu0 0.0
      %825 = vmatpush1.msra.mxu0 %v759
      %826 = vmatprep.subr.mxu0 0.0
      %827 = vmatpush2.msra.mxu0 0.0
      %828 = vmatprep.subr.mxu0 0.0
      %829 = vmatpush2.msra.mxu0 0.0
      %830 = vmatprep.subr.mxu0 0.0
      %831 = vmatpush2.msra.mxu0 0.0
      %832 = vmatprep.subr.mxu0 0.0
      %833 = vmatpush2.msra.mxu0 0.0
      %834 = vmatprep.subr.mxu0 0.0
      %835 = vmatpush2.msra.mxu0 0.0
      %836 = vmatprep.subr.mxu0 0.0
      %837 = vmatpush2.msra.mxu0 0.0
      %838 = vmatprep.subr.mxu0 0.0
      %839 = vmatpush2.msra.mxu0 0.0
      %840 = vmatprep.subr.mxu0 0.0
      %841 = vmatpush2.msra.mxu0 0.0
      %842 = vmatprep.subr.mxu0 0.0
      %843 = vmatpush2.msra.mxu0 %v782
      %844 = vmatprep.subr.mxu0 0.0
      %845 = vmatpush2.msra.mxu0 %v781
      %846 = vmatprep.subr.mxu0 0.0
      %847 = vmatpush2.msra.mxu0 %v780
      %848 = vmatprep.subr.mxu0 0.0
      %849 = vmatpush2.msra.mxu0 %v779
      %850 = vmatprep.subr.mxu0 0.0
      %851 = vmatpush2.msra.mxu0 %v778
      %852 = vmatprep.subr.mxu0 0.0
      %853 = vmatpush2.msra.mxu0 %v777
      %854 = vmatprep.subr.mxu0 0.0
      %855 = vmatpush2.msra.mxu0 %v776
      %856 = vmatprep.subr.mxu0 0.0
      %857 = vmatpush2.msra.mxu0 %v775
      %858 = vmatprep.mubr.f32.mxu0 %v792
      %859 = vmatmul.mubr.f32.gmra.mxu0 %v755
      %v860 = vpop.f32.mrf.mxu0
      %v861 = vadd.f32 %v788, %v860
      %v862 = vpop.f32.mrf.mxu0
      %863 = vdwg.mxu0
      %vm864 = vcmask 17408
      %865 = vst.msk [vmem:[#allocation3] sm:$0x3] %vm864, %v861
    $region37: #{tpu_custom_call.1} parent=1 // pred_fallthru
      _
    // Predicated region
    $region38: #{tpu_custom_call.1} parent=1 // pred_check
      _
    $region39: #{tpu_custom_call.1} parent=1 // pred_check_branch
      %867 = sbr.rel (0) target = $region41
    $region40: #{tpu_custom_call.1} parent=1 // pred_region
      %s869 = ssub.s32 32, 32
      %870 = vsyncadd [#allocation4], %s869
      %s872 = sshll.u32 [#allocation3], 4
      %s873 = int_to_ptr.vmem [resolvable:$true] %s872
      %875 = dma.vmem_to_hbm [thread:$0]  %s873, 32, %s7, [#allocation4]
    $region41: #{tpu_custom_call.1} parent=1 // pred_fallthru
      _
    // Predicated region
    $region42: #{tpu_custom_call.1} parent=1 // pred_check
      _
    $region43: #{tpu_custom_call.1} parent=1 // pred_check_branch
      %877 = sbr.rel (0) target = $region45
    $region44: #{tpu_custom_call.1} parent=1 // pred_region
      %878 = dma.done [#allocation4], 32
    $region45: #{tpu_custom_call.1} parent=1 // pred_fallthru
      _
    %879 = vsyncpa [#allocation4], 1

</llo_original>
